<compile_context>
chip_gen: v6e
topology: v6e:2x2x1
jax: 0.10.0
libtpu: 0.0.40
codegen_flags: <defaults>
</compile_context>

<pallas_src>
import jax
import jax.numpy as jnp
from jax.experimental import pallas as pl
from jax.experimental.pallas import tpu as pltpu

LANE = 128   # vreg lane width
SUB = 8      # vreg sublane count (f32)


def xor_mlp_kernel(w1_ref, b1_ref, w2_ref, b2_ref, x_ref, o_ref):
    # x_ref: (2, TS, LANE) f32 in VMEM -- batch dense on sublanes AND lanes.
    # o_ref: (TS, LANE)    f32 in VMEM.
    # w1_ref: (4, 2), b1_ref: (4,), w2_ref: (1, 4), b2_ref: (1,) in SMEM
    # (PyTorch nn.Linear layout: weight[out_features, in_features]).
    x0 = x_ref[0]                            # (TS, LANE) dense tile
    x1 = x_ref[1]                            # (TS, LANE) dense tile

    # fc2 accumulator, initialized with the fc2 bias (scalar broadcast).
    z = jnp.zeros_like(x0) + b2_ref[0]       # (TS, LANE)

    # Unrolled fc1 + tanh fused into fc2: pure VPU/EUP, no MXU.
    for j in range(4):
        h_j = jnp.tanh(w1_ref[j, 0] * x0 + w1_ref[j, 1] * x1 + b1_ref[j])
        z = z + w2_ref[0, j] * h_j

    # sigmoid(z) = 0.5 * tanh(0.5 * z) + 0.5  -- exact identity, one EUP push.
    o_ref[...] = (0.5 * jnp.tanh(0.5 * z) + 0.5).astype(o_ref.dtype)


def xor_mlp_forward(x, w1, b1, w2, b2, *, ts_target=2048):
    """XOR_MLP forward.

    x : (B, 2) float32
    w1: (4, 2), b1: (4,), w2: (1, 4), b2: (1,)   (PyTorch nn.Linear layout)
    Returns (B, 1) float32, matching XOR_MLP.forward.

    ts_target: max sublane rows per grid step. 2048 -> x block (2,2048,128)
    f32 = 2 MiB, out block (2048,128) = 1 MiB; ~6 MiB double-buffered.
    """
    B = x.shape[0]

    # Sublane rows of valid batch data (128 batch elements per row),
    # at least one full (8,128) tile.
    rows = max(pl.cdiv(B, LANE), SUB)

    # Number of grid steps: 1 if everything fits in one tile, otherwise an
    # even count >= 2 so v7x's two TensorCores both get balanced work.
    n_steps = pl.cdiv(rows, ts_target)
    if n_steps > 1 and n_steps % 2:
        n_steps += 1

    # Sublane tile, rounded up to a multiple of 8 (f32 sublane packing).
    ts = pl.cdiv(rows, n_steps)
    ts = pl.cdiv(ts, SUB) * SUB

    rows_pad = n_steps * ts
    b_pad = rows_pad * LANE

    # Feature-major, zero-padded, batch packed onto (sublane, lane):
    # (B, 2) -> (2, b_pad) -> (2, rows_pad, LANE).
    xt = jnp.pad(x.astype(jnp.float32).T, ((0, 0), (0, b_pad - B)))
    xt = xt.reshape(2, rows_pad, LANE)

    smem = pl.BlockSpec(memory_space=pltpu.MemorySpace.SMEM)

    out = pl.pallas_call(
        xor_mlp_kernel,
        out_shape=jax.ShapeDtypeStruct((rows_pad, LANE), jnp.float32),
        grid=(n_steps,),
        in_specs=[
            smem,                                              # w1 (4, 2)
            smem,                                              # b1 (4,)
            smem,                                              # w2 (1, 4)
            smem,                                              # b2 (1,)
            pl.BlockSpec((2, ts, LANE), lambda i: (0, i, 0)),  # x tile
        ],
        out_specs=pl.BlockSpec((ts, LANE), lambda i: (i, 0)),
        compiler_params=pltpu.CompilerParams(
            dimension_semantics=("parallel",),   # shards grid over v7x's 2 TCs
        ),
    )(w1, b1, w2, b2, xt)

    # Row-major flatten restores the original batch order.
    return out.reshape(-1)[:B].reshape(B, 1)


def init_params(key):
    """PyTorch nn.Linear default init: U(-1/sqrt(fan_in), 1/sqrt(fan_in)).
    Weights stored in PyTorch (out_features, in_features) layout."""
    k1, k2, k3, k4 = jax.random.split(key, 4)
    bound1 = 1.0 / jnp.sqrt(2.0)   # fc1 fan_in = 2
    bound2 = 1.0 / jnp.sqrt(4.0)   # fc2 fan_in = 4
    w1 = jax.random.uniform(k1, (4, 2), jnp.float32, -bound1, bound1)
    b1 = jax.random.uniform(k2, (4,), jnp.float32, -bound1, bound1)
    w2 = jax.random.uniform(k3, (1, 4), jnp.float32, -bound2, bound2)
    b2 = jax.random.uniform(k4, (1,), jnp.float32, -bound2, bound2)
    return w1, b1, w2, b2


def reference_forward(x, w1, b1, w2, b2):
    h = jnp.tanh(jnp.matmul(x, w1.T, precision=jax.lax.Precision.HIGHEST) + b1)
    z = jnp.matmul(h, w2.T, precision=jax.lax.Precision.HIGHEST) + b2
    return jax.nn.sigmoid(z)


if __name__ == "__main__":
    key = jax.random.PRNGKey(0)
    kx, kp = jax.random.split(key)

    # Small batch of 2-D inputs (classic XOR setting is B=4; use B=8 here).
    B = 8
    x = jax.random.uniform(kx, (B, 2), jnp.float32)
    w1, b1, w2, b2 = init_params(kp)

    out = xor_mlp_forward(x, w1, b1, w2, b2)
    out = jax.block_until_ready(out)

    ref = reference_forward(x, w1, b1, w2, b2)
    assert out.shape == (B, 1)
    assert jnp.allclose(out, ref, atol=1e-5, rtol=1e-5)

    print("KERNEL_OK")
</pallas_src>

<mosaic_0001>
module attributes {stable_mosaic.version = 11 : i64} {
  func.func @xor_mlp_kernel(%arg0: i32, %arg1: memref<4x2xf32, #tpu.memory_space<smem>>, %arg2: memref<4xf32, #tpu.memory_space<smem>>, %arg3: memref<1x4xf32, #tpu.memory_space<smem>>, %arg4: memref<1xf32, #tpu.memory_space<smem>>, %arg5: memref<2x8x128xf32, #tpu.memory_space<vmem>>, %arg6: memref<8x128xf32, #tpu.memory_space<vmem>>) attributes {dimension_semantics = [#tpu.dimension_semantics<parallel>], iteration_bounds = array<i64: 1>, scalar_prefetch = 0 : i64, scratch_operands = 0 : i64, tpu.core_type = #tpu.core_type<tc>, window_params = [{transform_indices = @transform_0, window_bounds = array<i64: 4, 2>}, {transform_indices = @transform_1, window_bounds = array<i64: 4>}, {transform_indices = @transform_2, window_bounds = array<i64: 1, 4>}, {transform_indices = @transform_3, window_bounds = array<i64: 1>}, {transform_indices = @transform_4, window_bounds = array<i64: 2, 8, 128>}, {transform_indices = @transform_5, window_bounds = array<i64: 8, 128>}]} {
    %c0 = arith.constant 0 : index
    %c0_0 = arith.constant 0 : index
    %c0_1 = arith.constant 0 : index
    %0 = vector.load %arg5[%c0, %c0_0, %c0_1] : memref<2x8x128xf32, #tpu.memory_space<vmem>>, vector<1x8x128xf32>
    %1 = vector.shape_cast %0 : vector<1x8x128xf32> to vector<8x128xf32>
    %c1 = arith.constant 1 : index
    %c0_2 = arith.constant 0 : index
    %c0_3 = arith.constant 0 : index
    %2 = vector.load %arg5[%c1, %c0_2, %c0_3] : memref<2x8x128xf32, #tpu.memory_space<vmem>>, vector<1x8x128xf32>
    %3 = vector.shape_cast %2 : vector<1x8x128xf32> to vector<8x128xf32>
    %cst = arith.constant 0.000000e+00 : f32
    %4 = vector.broadcast %cst : f32 to vector<8x128xf32>
    %c0_4 = arith.constant 0 : index
    %5 = memref.load %arg4[%c0_4] : memref<1xf32, #tpu.memory_space<smem>>
    %6 = vector.broadcast %5 : f32 to vector<8x128xf32>
    %7 = arith.addf %4, %6 : vector<8x128xf32>
    %c0_5 = arith.constant 0 : index
    %c0_6 = arith.constant 0 : index
    %8 = memref.load %arg1[%c0_5, %c0_6] : memref<4x2xf32, #tpu.memory_space<smem>>
    %9 = vector.broadcast %8 : f32 to vector<8x128xf32>
    %10 = arith.mulf %9, %1 : vector<8x128xf32>
    %c0_7 = arith.constant 0 : index
    %c1_8 = arith.constant 1 : index
    %11 = memref.load %arg1[%c0_7, %c1_8] : memref<4x2xf32, #tpu.memory_space<smem>>
    %12 = vector.broadcast %11 : f32 to vector<8x128xf32>
    %13 = arith.mulf %12, %3 : vector<8x128xf32>
    %14 = arith.addf %10, %13 : vector<8x128xf32>
    %c0_9 = arith.constant 0 : index
    %15 = memref.load %arg2[%c0_9] : memref<4xf32, #tpu.memory_space<smem>>
    %16 = vector.broadcast %15 : f32 to vector<8x128xf32>
    %17 = arith.addf %14, %16 : vector<8x128xf32>
    %18 = math.tanh %17 : vector<8x128xf32>
    %c0_10 = arith.constant 0 : index
    %c0_11 = arith.constant 0 : index
    %19 = memref.load %arg3[%c0_10, %c0_11] : memref<1x4xf32, #tpu.memory_space<smem>>
    %20 = vector.broadcast %19 : f32 to vector<8x128xf32>
    %21 = arith.mulf %20, %18 : vector<8x128xf32>
    %22 = arith.addf %7, %21 : vector<8x128xf32>
    %c1_12 = arith.constant 1 : index
    %c0_13 = arith.constant 0 : index
    %23 = memref.load %arg1[%c1_12, %c0_13] : memref<4x2xf32, #tpu.memory_space<smem>>
    %24 = vector.broadcast %23 : f32 to vector<8x128xf32>
    %25 = arith.mulf %24, %1 : vector<8x128xf32>
    %c1_14 = arith.constant 1 : index
    %c1_15 = arith.constant 1 : index
    %26 = memref.load %arg1[%c1_14, %c1_15] : memref<4x2xf32, #tpu.memory_space<smem>>
    %27 = vector.broadcast %26 : f32 to vector<8x128xf32>
    %28 = arith.mulf %27, %3 : vector<8x128xf32>
    %29 = arith.addf %25, %28 : vector<8x128xf32>
    %c1_16 = arith.constant 1 : index
    %30 = memref.load %arg2[%c1_16] : memref<4xf32, #tpu.memory_space<smem>>
    %31 = vector.broadcast %30 : f32 to vector<8x128xf32>
    %32 = arith.addf %29, %31 : vector<8x128xf32>
    %33 = math.tanh %32 : vector<8x128xf32>
    %c0_17 = arith.constant 0 : index
    %c1_18 = arith.constant 1 : index
    %34 = memref.load %arg3[%c0_17, %c1_18] : memref<1x4xf32, #tpu.memory_space<smem>>
    %35 = vector.broadcast %34 : f32 to vector<8x128xf32>
    %36 = arith.mulf %35, %33 : vector<8x128xf32>
    %37 = arith.addf %22, %36 : vector<8x128xf32>
    %c2 = arith.constant 2 : index
    %c0_19 = arith.constant 0 : index
    %38 = memref.load %arg1[%c2, %c0_19] : memref<4x2xf32, #tpu.memory_space<smem>>
    %39 = vector.broadcast %38 : f32 to vector<8x128xf32>
    %40 = arith.mulf %39, %1 : vector<8x128xf32>
    %c2_20 = arith.constant 2 : index
    %c1_21 = arith.constant 1 : index
    %41 = memref.load %arg1[%c2_20, %c1_21] : memref<4x2xf32, #tpu.memory_space<smem>>
    %42 = vector.broadcast %41 : f32 to vector<8x128xf32>
    %43 = arith.mulf %42, %3 : vector<8x128xf32>
    %44 = arith.addf %40, %43 : vector<8x128xf32>
    %c2_22 = arith.constant 2 : index
    %45 = memref.load %arg2[%c2_22] : memref<4xf32, #tpu.memory_space<smem>>
    %46 = vector.broadcast %45 : f32 to vector<8x128xf32>
    %47 = arith.addf %44, %46 : vector<8x128xf32>
    %48 = math.tanh %47 : vector<8x128xf32>
    %c0_23 = arith.constant 0 : index
    %c2_24 = arith.constant 2 : index
    %49 = memref.load %arg3[%c0_23, %c2_24] : memref<1x4xf32, #tpu.memory_space<smem>>
    %50 = vector.broadcast %49 : f32 to vector<8x128xf32>
    %51 = arith.mulf %50, %48 : vector<8x128xf32>
    %52 = arith.addf %37, %51 : vector<8x128xf32>
    %c3 = arith.constant 3 : index
    %c0_25 = arith.constant 0 : index
    %53 = memref.load %arg1[%c3, %c0_25] : memref<4x2xf32, #tpu.memory_space<smem>>
    %54 = vector.broadcast %53 : f32 to vector<8x128xf32>
    %55 = arith.mulf %54, %1 : vector<8x128xf32>
    %c3_26 = arith.constant 3 : index
    %c1_27 = arith.constant 1 : index
    %56 = memref.load %arg1[%c3_26, %c1_27] : memref<4x2xf32, #tpu.memory_space<smem>>
    %57 = vector.broadcast %56 : f32 to vector<8x128xf32>
    %58 = arith.mulf %57, %3 : vector<8x128xf32>
    %59 = arith.addf %55, %58 : vector<8x128xf32>
    %c3_28 = arith.constant 3 : index
    %60 = memref.load %arg2[%c3_28] : memref<4xf32, #tpu.memory_space<smem>>
    %61 = vector.broadcast %60 : f32 to vector<8x128xf32>
    %62 = arith.addf %59, %61 : vector<8x128xf32>
    %63 = math.tanh %62 : vector<8x128xf32>
    %c0_29 = arith.constant 0 : index
    %c3_30 = arith.constant 3 : index
    %64 = memref.load %arg3[%c0_29, %c3_30] : memref<1x4xf32, #tpu.memory_space<smem>>
    %65 = vector.broadcast %64 : f32 to vector<8x128xf32>
    %66 = arith.mulf %65, %63 : vector<8x128xf32>
    %67 = arith.addf %52, %66 : vector<8x128xf32>
    %cst_31 = arith.constant 5.000000e-01 : f32
    %68 = vector.broadcast %cst_31 : f32 to vector<8x128xf32>
    %69 = arith.mulf %68, %67 : vector<8x128xf32>
    %70 = math.tanh %69 : vector<8x128xf32>
    %cst_32 = arith.constant 5.000000e-01 : f32
    %71 = vector.broadcast %cst_32 : f32 to vector<8x128xf32>
    %72 = arith.mulf %71, %70 : vector<8x128xf32>
    %cst_33 = arith.constant 5.000000e-01 : f32
    %73 = vector.broadcast %cst_33 : f32 to vector<8x128xf32>
    %74 = arith.addf %72, %73 : vector<8x128xf32>
    %c0_34 = arith.constant 0 : index
    %c0_35 = arith.constant 0 : index
    %75 = vector.load %arg6[%c0_34, %c0_35] : memref<8x128xf32, #tpu.memory_space<vmem>>, vector<8x128xf32>
    tpu.vector_store %arg6[%c0_34, %c0_35], %74 {strides = array<i32>} : memref<8x128xf32, #tpu.memory_space<vmem>>, vector<8x128xf32>,
    return
  }
  func.func @transform_0(%arg0: i32) -> (i32, i32) {
    %c0_i32 = arith.constant 0 : i32
    %c0_i32_0 = arith.constant 0 : i32
    %c0_i32_1 = arith.constant 0 : i32
    return %c0_i32, %c0_i32_0 : i32, i32
  }
  func.func @transform_1(%arg0: i32) -> i32 {
    %c0_i32 = arith.constant 0 : i32
    %c0_i32_0 = arith.constant 0 : i32
    return %c0_i32 : i32
  }
  func.func @transform_2(%arg0: i32) -> (i32, i32) {
    %c0_i32 = arith.constant 0 : i32
    %c0_i32_0 = arith.constant 0 : i32
    %c0_i32_1 = arith.constant 0 : i32
    return %c0_i32, %c0_i32_0 : i32, i32
  }
  func.func @transform_3(%arg0: i32) -> i32 {
    %c0_i32 = arith.constant 0 : i32
    %c0_i32_0 = arith.constant 0 : i32
    return %c0_i32 : i32
  }
  func.func @transform_4(%arg0: i32) -> (i32, i32, i32) {
    %c0_i32 = arith.constant 0 : i32
    %c0_i32_0 = arith.constant 0 : i32
    %c0_i32_1 = arith.constant 0 : i32
    return %c0_i32, %arg0, %c0_i32_0 : i32, i32, i32
  }
  func.func @transform_5(%arg0: i32) -> (i32, i32) {
    %c0_i32 = arith.constant 0 : i32
    %c0_i32_0 = arith.constant 0 : i32
    return %arg0, %c0_i32 : i32, i32
  }
}

</mosaic_0001>

<llo_original>
// kernel: tpu_custom_call.1
$region0: #{tpu_custom_call.1}
  #allocation0 [shape = 'u32[]', space=smem, size = 0x4, offset = 0x4, fixed_abs, tag = 'smem constant byte address 0x4 - core index']
  #allocation1 [shape = 'u32[144,128]{1,0:T(1,128)}', space=vmem, size = 0x12000, scoped, tag = 'internal scratch']
  #allocation2 [shape = 'f32[1]{0:T(128)S(6)}', space=smem, size = 0x200, scoped, tag = 'scoped memory for tpu_custom_call.1']
  %s0 = inlined_call_operand.vmem [shape: f32[4,2], index: 0, kind: input, shape index: {}]
  %s1 = inlined_call_operand.vmem [shape: f32[4], index: 1, kind: input, shape index: {}]
  %s2 = inlined_call_operand.vmem [shape: f32[1,4], index: 2, kind: input, shape index: {}]
  %s3 = inlined_call_operand.<no memory space> [shape: f32[1], index: 3, kind: input, shape index: {}]
  %s4 = inlined_call_operand.hbm [shape: f32[2,8,128], index: 4, kind: input, shape index: {}]
  %s5 = inlined_call_operand.hbm [shape: f32[8,128], index: 5, kind: output, shape index: {}]
  %s6 = sld [smem:[#allocation0]]
  $region46: #{tpu_custom_call.1} parent=0
    _
  %s8 = ssub.s32 1, %s6
  %s9 = scalar_select 0, %s8, %s6
  %10 = sst [smem:[#allocation2]] %s3
  $region1: #{tpu_custom_call.1} parent=0
    #allocation3 [shape = 'u8[2048]{0}', space=smem, size = 0x800, scoped, tag = 'input window, operand 0, single buffered']
    #allocation4 [shape = 's32[1]{0}', space=sflag, size = 0x4, scoped, tag = 'scoped memory for tpu_custom_call.1']
    #allocation5 [shape = 's32[1]{0}', space=sflag, size = 0x4, scoped, tag = 'scoped memory for tpu_custom_call.1']
    #allocation6 [shape = 's32[1]{0}', space=sflag, size = 0x4, scoped, tag = 'scoped memory for tpu_custom_call.1']
    #allocation7 [shape = 'u8[512]{0}', space=smem, size = 0x200, scoped, tag = 'input window, operand 1, single buffered']
    #allocation8 [shape = 's32[1]{0}', space=sflag, size = 0x4, scoped, tag = 'scoped memory for tpu_custom_call.1']
    #allocation9 [shape = 'u8[512]{0}', space=smem, size = 0x200, scoped, tag = 'input window, operand 2, single buffered']
    #allocation10 [shape = 'u8[8192]{0}', space=vmem, size = 0x2000, scoped, tag = 'input window, operand 4, single buffered']
    #allocation11 [shape = 'u8[4096]{0}', space=vmem, size = 0x1000, scoped, tag = 'output window, operand 0, single buffered']
    %11 = vsyncpa [#allocation6], 0
    %12 = vsyncpa [#allocation8], 0
    %13 = vsyncpa [#allocation4], 0
    %14 = vsyncpa [#allocation5], 0
    // Predicated region
    $region2: #{tpu_custom_call.1} parent=1 // pred_check
      _
    $region3: #{tpu_custom_call.1} parent=1 // pred_check_branch
      %16 = sbr.rel (0) target = $region5
    $region4: #{tpu_custom_call.1} parent=1 // pred_region
      %s18 = ssub.s32 64, 64
      %19 = vsyncadd [#allocation6], %s18
      %s21 = sshll.u32 %s0, 4
      %s22 = int_to_ptr.vmem [resolvable:$true] %s21
      %24 = dma.vmem_to_smem %s22, 64, [#allocation3], [#allocation6]
    $region5: #{tpu_custom_call.1} parent=1 // pred_fallthru
      _
    // Predicated region
    $region6: #{tpu_custom_call.1} parent=1 // pred_check
      _
    $region7: #{tpu_custom_call.1} parent=1 // pred_check_branch
      %26 = sbr.rel (0) target = $region9
    $region8: #{tpu_custom_call.1} parent=1 // pred_region
      %s28 = ssub.s32 16, 16
      %29 = vsyncadd [#allocation8], %s28
      %s31 = sshll.u32 %s1, 4
      %s32 = int_to_ptr.vmem [resolvable:$true] %s31
      %34 = dma.vmem_to_smem %s32, 16, [#allocation7], [#allocation8]
    $region9: #{tpu_custom_call.1} parent=1 // pred_fallthru
      _
    // Predicated region
    $region10: #{tpu_custom_call.1} parent=1 // pred_check
      _
    $region11: #{tpu_custom_call.1} parent=1 // pred_check_branch
      %36 = sbr.rel (0) target = $region13
    $region12: #{tpu_custom_call.1} parent=1 // pred_region
      %s38 = ssub.s32 16, 16
      %39 = vsyncadd [#allocation8], %s38
      %s41 = sshll.u32 %s2, 4
      %s42 = int_to_ptr.vmem [resolvable:$true] %s41
      %44 = dma.vmem_to_smem %s42, 16, [#allocation9], [#allocation8]
    $region13: #{tpu_custom_call.1} parent=1 // pred_fallthru
      _
    // Predicated region
    $region14: #{tpu_custom_call.1} parent=1 // pred_check
      _
    $region15: #{tpu_custom_call.1} parent=1 // pred_check_branch
      %46 = sbr.rel (0) target = $region17
    $region16: #{tpu_custom_call.1} parent=1 // pred_region
      _
    $region17: #{tpu_custom_call.1} parent=1 // pred_fallthru
      _
    // Predicated region
    $region18: #{tpu_custom_call.1} parent=1 // pred_check
      _
    $region19: #{tpu_custom_call.1} parent=1 // pred_check_branch
      %48 = sbr.rel (0) target = $region21
    $region20: #{tpu_custom_call.1} parent=1 // pred_region
      %s50 = ssub.s32 256, 256
      %51 = vsyncadd [#allocation4], %s50
      %s52 = sshll.u32 [#allocation10], 4
      %s53 = int_to_ptr.vmem [resolvable:$true] %s52
      %58 = dma.hbm_to_vmem [thread:$0]  %s4, 256, %s53, [#allocation4], 128, 128, 8
    $region21: #{tpu_custom_call.1} parent=1 // pred_fallthru
      _
    // Predicated region
    $region22: #{tpu_custom_call.1} parent=1 // pred_check
      _
    $region23: #{tpu_custom_call.1} parent=1 // pred_check_branch
      %60 = sbr.rel (0) target = $region25
    $region24: #{tpu_custom_call.1} parent=1 // pred_region
      %61 = dma.done [#allocation6], 64
    $region25: #{tpu_custom_call.1} parent=1 // pred_fallthru
      _
    // Predicated region
    $region26: #{tpu_custom_call.1} parent=1 // pred_check
      _
    $region27: #{tpu_custom_call.1} parent=1 // pred_check_branch
      %63 = sbr.rel (0) target = $region29
    $region28: #{tpu_custom_call.1} parent=1 // pred_region
      %64 = dma.done [#allocation8], 16
    $region29: #{tpu_custom_call.1} parent=1 // pred_fallthru
      _
    // Predicated region
    $region30: #{tpu_custom_call.1} parent=1 // pred_check
      _
    $region31: #{tpu_custom_call.1} parent=1 // pred_check_branch
      %66 = sbr.rel (0) target = $region33
    $region32: #{tpu_custom_call.1} parent=1 // pred_region
      %67 = dma.done [#allocation8], 16
    $region33: #{tpu_custom_call.1} parent=1 // pred_fallthru
      _
    // Predicated region
    $region34: #{tpu_custom_call.1} parent=1 // pred_check
      _
    $region35: #{tpu_custom_call.1} parent=1 // pred_check_branch
      %69 = sbr.rel (0) target = $region37
    $region36: #{tpu_custom_call.1} parent=1 // pred_region
      %70 = dma.done [#allocation4], 256
    $region37: #{tpu_custom_call.1} parent=1 // pred_fallthru
      _
    %71 = sfence
    %v72 = vld [vmem:[#allocation10] sm:$0xff]
    %s73 = scalar_lea.vmem [#allocation10], 8
    %v74 = vld [vmem:[%s73] sm:$0xff]
    %s75 = sld [smem:[#allocation2]]
    %v76 = vstv %s75
    %v77 = vadd.f32 %v76, 0.0
    %s78 = sld [smem:[#allocation3]]
    %v79 = vstv %s78
    %v80 = vmul.f32 %v79, %v72
    %s81 = sld [smem:[#allocation3 + $0x1]]
    %v82 = vstv %s81
    %v83 = vmul.f32 %v82, %v74
    %v84 = vadd.f32 %v80, %v83
    %s85 = sld [smem:[#allocation7]]
    %v86 = vstv %s85
    %v87 = vadd.f32 %v84, %v86
    %v88 = vtanh.pop %v87
    %s89 = sld [smem:[#allocation9]]
    %v90 = vstv %s89
    %v91 = vmul.f32 %v90, %v88
    %v92 = vadd.f32 %v77, %v91
    %s93 = sld [smem:[#allocation3 + $0x80]]
    %v94 = vstv %s93
    %v95 = vmul.f32 %v94, %v72
    %s96 = sld [smem:[#allocation3 + $0x81]]
    %v97 = vstv %s96
    %v98 = vmul.f32 %v97, %v74
    %v99 = vadd.f32 %v95, %v98
    %s100 = sld [smem:[#allocation7 + $0x1]]
    %v101 = vstv %s100
    %v102 = vadd.f32 %v99, %v101
    %v103 = vtanh.pop %v102
    %s104 = sld [smem:[#allocation9 + $0x1]]
    %v105 = vstv %s104
    %v106 = vmul.f32 %v105, %v103
    %v107 = vadd.f32 %v92, %v106
    %s108 = sld [smem:[#allocation3 + $0x100]]
    %v109 = vstv %s108
    %v110 = vmul.f32 %v109, %v72
    %s111 = sld [smem:[#allocation3 + $0x101]]
    %v112 = vstv %s111
    %v113 = vmul.f32 %v112, %v74
    %v114 = vadd.f32 %v110, %v113
    %s115 = sld [smem:[#allocation7 + $0x2]]
    %v116 = vstv %s115
    %v117 = vadd.f32 %v114, %v116
    %v118 = vtanh.pop %v117
    %s119 = sld [smem:[#allocation9 + $0x2]]
    %v120 = vstv %s119
    %v121 = vmul.f32 %v120, %v118
    %v122 = vadd.f32 %v107, %v121
    %s123 = sld [smem:[#allocation3 + $0x180]]
    %v124 = vstv %s123
    %v125 = vmul.f32 %v124, %v72
    %s126 = sld [smem:[#allocation3 + $0x181]]
    %v127 = vstv %s126
    %v128 = vmul.f32 %v127, %v74
    %v129 = vadd.f32 %v125, %v128
    %s130 = sld [smem:[#allocation7 + $0x3]]
    %v131 = vstv %s130
    %v132 = vadd.f32 %v129, %v131
    %v133 = vtanh.pop %v132
    %s134 = sld [smem:[#allocation9 + $0x3]]
    %v135 = vstv %s134
    %v136 = vmul.f32 %v135, %v133
    %v137 = vadd.f32 %v122, %v136
    %v138 = vmul.f32 %v137, 0.5
    %v139 = vtanh.pop %v138
    %v140 = vmul.f32 %v139, 0.5
    %v141 = vadd.f32 %v140, 0.5
    %142 = vst [vmem:[#allocation11] sm:$0xff] %v141
    // Predicated region
    $region38: #{tpu_custom_call.1} parent=1 // pred_check
      _
    $region39: #{tpu_custom_call.1} parent=1 // pred_check_branch
      %144 = sbr.rel (0) target = $region41
    $region40: #{tpu_custom_call.1} parent=1 // pred_region
      %s146 = ssub.s32 128, 128
      %147 = vsyncadd [#allocation5], %s146
      %s149 = sshll.u32 [#allocation11], 4
      %s150 = int_to_ptr.vmem [resolvable:$true] %s149
      %152 = dma.vmem_to_hbm [thread:$0]  %s150, 128, %s5, [#allocation5]
    $region41: #{tpu_custom_call.1} parent=1 // pred_fallthru
      _
    // Predicated region
    $region42: #{tpu_custom_call.1} parent=1 // pred_check
      _
    $region43: #{tpu_custom_call.1} parent=1 // pred_check_branch
      %154 = sbr.rel (0) target = $region45
    $region44: #{tpu_custom_call.1} parent=1 // pred_region
      %155 = dma.done [#allocation5], 128
    $region45: #{tpu_custom_call.1} parent=1 // pred_fallthru
      _
    %156 = vsyncpa [#allocation4], 1
    %157 = vsyncpa [#allocation5], 1
    %158 = vsyncpa [#allocation6], 1
    %159 = vsyncpa [#allocation8], 1

</llo_original>
